<compile_context>
chip_gen: v6e
topology: v6e:2x2x1
jax: 0.10.0
libtpu: 0.0.40
codegen_flags: <defaults>
</compile_context>

<pallas_src>
import functools

import jax
import jax.numpy as jnp
from jax.experimental import pallas as pl
from jax.experimental.pallas import tpu as pltpu

_PAIRWISE_EPS = 1e-6  # matches torch.nn.functional.pairwise_distance default eps

# Sizing knobs (bytes).  3 inputs x 2 pipeline buffers x 4 MiB = 24 MiB plus a
# few block-sized f32 temporaries stays under the 48 MiB scoped limit, which is
# safe on v7x (64 MiB physical VMEM) as well as v5e/v6e (128 MiB).  On v5e/v6e
# these could be raised (~8 MiB / ~96 MiB) for a few extra % of roofline.
_TARGET_BLOCK_BYTES = 4 * 1024 * 1024
_VMEM_LIMIT_BYTES = 48 * 1024 * 1024


def _obj_latent_loss_kernel(pred_ref, target_ref, neg_ref, out_ref, *,
                            margin, batch, tile_b, feat, need_mask):
    pred = pred_ref[...].astype(jnp.float32)
    target = target_ref[...].astype(jnp.float32)
    neg = neg_ref[...].astype(jnp.float32)

    diff_pt = pred - target
    diff_pn = pred - neg

    # Per-row moments (lane-axis reduces).  pairwise_distance's eps is folded:
    #   ||d + eps||^2 = sum(d^2) + 2*eps*sum(d) + D*eps^2
    s2_pt = jnp.sum(diff_pt * diff_pt, axis=-1, keepdims=True)   # (tile_b, 1)
    s1_pt = jnp.sum(diff_pt, axis=-1, keepdims=True)
    s2_pn = jnp.sum(diff_pn * diff_pn, axis=-1, keepdims=True)
    s1_pn = jnp.sum(diff_pn, axis=-1, keepdims=True)

    eps_quad = feat * (_PAIRWISE_EPS * _PAIRWISE_EPS)
    pos_sq = jnp.maximum(s2_pt + (2.0 * _PAIRWISE_EPS) * s1_pt + eps_quad, 0.0)
    neg_sq = jnp.maximum(s2_pn + (2.0 * _PAIRWISE_EPS) * s1_pn + eps_quad, 0.0)
    pos_dist = jnp.sqrt(pos_sq)
    neg_dist = jnp.sqrt(neg_sq)
    hinge = jnp.maximum(pos_dist - neg_dist + margin, 0.0)        # (tile_b, 1)

    mse_rows = s2_pt                                              # (tile_b, 1)
    if need_mask:
        # Partial tail block: rows >= batch hold garbage (NaN in interpret
        # mode).  Use a select on the row-reduced quantities so the garbage is
        # sanitized instead of propagated (multiply-by-0 keeps NaN).
        row_ids = (pl.program_id(0) * tile_b
                   + jax.lax.broadcasted_iota(jnp.int32, (tile_b, 1), 0))
        valid = row_ids < batch
        mse_rows = jnp.where(valid, mse_rows, 0.0)
        hinge = jnp.where(valid, hinge, 0.0)

    sum_sq = jnp.sum(mse_rows)
    sum_hinge = jnp.sum(hinge)

    # Pack the two partial sums into a lane-aligned (8, 128) slab; the wrapper
    # only reads lanes 0 and 1 of row 0 after summing over blocks.
    lane = jax.lax.broadcasted_iota(jnp.int32, (8, 128), 1)
    out_ref[0] = jnp.where(lane == 0, sum_sq,
                           jnp.where(lane == 1, sum_hinge, 0.0))


def _round_up8(x):
    return ((x + 7) // 8) * 8


def _choose_tile_b(batch, feat, itemsize):
    tile_b = _TARGET_BLOCK_BYTES // max(1, feat * itemsize)
    tile_b = max(8, (tile_b // 8) * 8)                # sublane-aligned
    if batch > 8:
        # Keep >= 2 blocks so the "parallel" axis can shard across v7x's two
        # TensorCores and the pipeliner has something to overlap.
        tile_b = min(tile_b, max(8, _round_up8(-(-batch // 2))))
    if tile_b >= batch:
        return batch                                   # full-dim block is legal
    return tile_b


def object_latent_loss(pred, target, neg, margin: float = 1.0, tile_b=None):
    """Returns (total_loss, mse_loss) as scalar float32 arrays (ObjectLatentLoss.forward)."""
    assert pred.shape == target.shape == neg.shape
    assert pred.ndim == 2, "expected (batch, latent_dim) latent vectors"
    B, D = pred.shape
    itemsize = jnp.dtype(pred.dtype).itemsize

    if tile_b is None:
        tile_b = _choose_tile_b(B, D, itemsize)
    assert tile_b == B or tile_b % 8 == 0, "tile_b must equal B or be a multiple of 8"

    num_blocks = pl.cdiv(B, tile_b)
    need_mask = (num_blocks * tile_b != B)

    kernel = functools.partial(
        _obj_latent_loss_kernel, margin=float(margin), batch=B,
        tile_b=tile_b, feat=float(D), need_mask=need_mask)

    partials = pl.pallas_call(
        kernel,
        out_shape=jax.ShapeDtypeStruct((num_blocks, 8, 128), jnp.float32),
        grid_spec=pltpu.PrefetchScalarGridSpec(
            num_scalar_prefetch=0,
            grid=(num_blocks,),
            in_specs=[
                pl.BlockSpec((tile_b, D), lambda i: (i, 0)),
                pl.BlockSpec((tile_b, D), lambda i: (i, 0)),
                pl.BlockSpec((tile_b, D), lambda i: (i, 0)),
            ],
            out_specs=pl.BlockSpec((1, 8, 128), lambda i: (i, 0, 0)),
        ),
        compiler_params=pltpu.CompilerParams(
            dimension_semantics=("parallel",),
            vmem_limit_bytes=_VMEM_LIMIT_BYTES,
        ),
        cost_estimate=pl.CostEstimate(
            flops=8 * B * D,
            transcendentals=2 * B,
            bytes_accessed=3 * B * D * itemsize + num_blocks * 8 * 128 * 4,
        ),
    )(pred, target, neg)

    # Tiny epilogue: sum per-block partials, divide exactly once.
    sums = jnp.sum(partials, axis=0)                 # (8, 128)
    mse = sums[0, 0] / jnp.float32(B * D)
    triplet = sums[0, 1] / jnp.float32(B)
    total = mse + triplet
    return total, mse


def _reference(pred, target, neg, margin=1.0):
    pred = pred.astype(jnp.float32)
    target = target.astype(jnp.float32)
    neg = neg.astype(jnp.float32)
    mse = jnp.mean((pred - target) ** 2)
    pos = jnp.sqrt(jnp.sum((pred - target + _PAIRWISE_EPS) ** 2, axis=-1))
    ngd = jnp.sqrt(jnp.sum((pred - neg + _PAIRWISE_EPS) ** 2, axis=-1))
    trip = jnp.mean(jnp.maximum(pos - ngd + margin, 0.0))
    return mse + trip, mse


if __name__ == "__main__":
    key = jax.random.PRNGKey(0)
    k1, k2, k3, k4, k5, k6, k7, k8, k9 = jax.random.split(key, 9)

    # Case 1: small, tile-friendly latents (single-block path).
    B, D = 8, 128
    pred = jax.random.normal(k1, (B, D), dtype=jnp.float32)
    target = jax.random.normal(k2, (B, D), dtype=jnp.float32)
    neg = jax.random.normal(k3, (B, D), dtype=jnp.float32)

    total, mse = jax.jit(object_latent_loss)(pred, target, neg)
    jax.block_until_ready((total, mse))
    ref_total, ref_mse = _reference(pred, target, neg)
    assert jnp.allclose(total, ref_total, rtol=1e-5, atol=1e-5), (total, ref_total)
    assert jnp.allclose(mse, ref_mse, rtol=1e-5, atol=1e-5), (mse, ref_mse)

    # Case 2: batch not divisible by the tile -> exercises tiled grid + tail mask.
    B2, D2 = 20, 256
    pred2 = jax.random.normal(k4, (B2, D2), dtype=jnp.float32)
    target2 = jax.random.normal(k5, (B2, D2), dtype=jnp.float32)
    neg2 = jax.random.normal(k6, (B2, D2), dtype=jnp.float32)
    ref_total2, ref_mse2 = _reference(pred2, target2, neg2)

    # 2a: default tiling (>=2 blocks with a partial tail).
    total2a, mse2a = jax.jit(object_latent_loss)(pred2, target2, neg2)
    jax.block_until_ready((total2a, mse2a))
    assert jnp.allclose(total2a, ref_total2, rtol=1e-5, atol=1e-5), (total2a, ref_total2)
    assert jnp.allclose(mse2a, ref_mse2, rtol=1e-5, atol=1e-5), (mse2a, ref_mse2)

    # 2b: explicit tile_b=8 -> 3 blocks, last one half-valid.
    total2b, mse2b = jax.jit(functools.partial(object_latent_loss, tile_b=8))(
        pred2, target2, neg2)
    jax.block_until_ready((total2b, mse2b))
    assert jnp.allclose(total2b, ref_total2, rtol=1e-5, atol=1e-5), (total2b, ref_total2)
    assert jnp.allclose(mse2b, ref_mse2, rtol=1e-5, atol=1e-5), (mse2b, ref_mse2)

    # Case 3: bf16 inputs (halved HBM traffic), upcast to f32 inside the kernel.
    B3, D3 = 24, 128
    pred3 = jax.random.normal(k7, (B3, D3), dtype=jnp.bfloat16)
    target3 = jax.random.normal(k8, (B3, D3), dtype=jnp.bfloat16)
    neg3 = jax.random.normal(k9, (B3, D3), dtype=jnp.bfloat16)
    total3, mse3 = jax.jit(object_latent_loss)(pred3, target3, neg3)
    jax.block_until_ready((total3, mse3))
    ref_total3, ref_mse3 = _reference(pred3, target3, neg3)
    assert jnp.allclose(total3, ref_total3, rtol=1e-4, atol=1e-4), (total3, ref_total3)
    assert jnp.allclose(mse3, ref_mse3, rtol=1e-4, atol=1e-4), (mse3, ref_mse3)

    print("KERNEL_OK")
</pallas_src>

<mosaic_0001>
module attributes {stable_mosaic.version = 11 : i64} {
  func.func @_obj_latent_loss_kernel(%arg0: i32, %arg1: memref<8x128xf32, #tpu.memory_space<vmem>>, %arg2: memref<8x128xf32, #tpu.memory_space<vmem>>, %arg3: memref<8x128xf32, #tpu.memory_space<vmem>>, %arg4: memref<1x8x128xf32, #tpu.memory_space<vmem>>) attributes {dimension_semantics = [#tpu.dimension_semantics<parallel>], iteration_bounds = array<i64: 1>, scalar_prefetch = 0 : i64, scratch_operands = 0 : i64, tpu.core_type = #tpu.core_type<tc>, window_params = [{transform_indices = @transform_0, window_bounds = array<i64: 8, 128>}, {transform_indices = @transform_1, window_bounds = array<i64: 8, 128>}, {transform_indices = @transform_2, window_bounds = array<i64: 8, 128>}, {transform_indices = @transform_3, window_bounds = array<i64: 1, 8, 128>}]} {
    %c0 = arith.constant 0 : index
    %c0_0 = arith.constant 0 : index
    %0 = vector.load %arg1[%c0, %c0_0] : memref<8x128xf32, #tpu.memory_space<vmem>>, vector<8x128xf32>
    %c0_1 = arith.constant 0 : index
    %c0_2 = arith.constant 0 : index
    %1 = vector.load %arg2[%c0_1, %c0_2] : memref<8x128xf32, #tpu.memory_space<vmem>>, vector<8x128xf32>
    %c0_3 = arith.constant 0 : index
    %c0_4 = arith.constant 0 : index
    %2 = vector.load %arg3[%c0_3, %c0_4] : memref<8x128xf32, #tpu.memory_space<vmem>>, vector<8x128xf32>
    %3 = arith.subf %0, %1 : vector<8x128xf32>
    %4 = arith.subf %0, %2 : vector<8x128xf32>
    %5 = arith.mulf %3, %3 : vector<8x128xf32>
    %cst = arith.constant dense<0.000000e+00> : vector<8xf32>
    %6 = vector.multi_reduction <add>, %5, %cst [1] : vector<8x128xf32> to vector<8xf32>
    %7 = vector.shape_cast %6 : vector<8xf32> to vector<8x1xf32>
    %cst_5 = arith.constant dense<0.000000e+00> : vector<8xf32>
    %8 = vector.multi_reduction <add>, %3, %cst_5 [1] : vector<8x128xf32> to vector<8xf32>
    %9 = vector.shape_cast %8 : vector<8xf32> to vector<8x1xf32>
    %10 = arith.mulf %4, %4 : vector<8x128xf32>
    %cst_6 = arith.constant dense<0.000000e+00> : vector<8xf32>
    %11 = vector.multi_reduction <add>, %10, %cst_6 [1] : vector<8x128xf32> to vector<8xf32>
    %12 = vector.shape_cast %11 : vector<8xf32> to vector<8x1xf32>
    %cst_7 = arith.constant dense<0.000000e+00> : vector<8xf32>
    %13 = vector.multi_reduction <add>, %4, %cst_7 [1] : vector<8x128xf32> to vector<8xf32>
    %14 = vector.shape_cast %13 : vector<8xf32> to vector<8x1xf32>
    %cst_8 = arith.constant 2.000000e-06 : f32
    %15 = vector.broadcast %cst_8 : f32 to vector<8x1xf32>
    %16 = arith.mulf %15, %9 : vector<8x1xf32>
    %17 = arith.addf %7, %16 : vector<8x1xf32>
    %cst_9 = arith.constant 1.280000e-10 : f32
    %18 = vector.broadcast %cst_9 : f32 to vector<8x1xf32>
    %19 = arith.addf %17, %18 : vector<8x1xf32>
    %cst_10 = arith.constant 0.000000e+00 : f32
    %20 = vector.broadcast %cst_10 : f32 to vector<8x1xf32>
    %21 = arith.maximumf %19, %20 : vector<8x1xf32>
    %cst_11 = arith.constant 2.000000e-06 : f32
    %22 = vector.broadcast %cst_11 : f32 to vector<8x1xf32>
    %23 = arith.mulf %22, %14 : vector<8x1xf32>
    %24 = arith.addf %12, %23 : vector<8x1xf32>
    %cst_12 = arith.constant 1.280000e-10 : f32
    %25 = vector.broadcast %cst_12 : f32 to vector<8x1xf32>
    %26 = arith.addf %24, %25 : vector<8x1xf32>
    %cst_13 = arith.constant 0.000000e+00 : f32
    %27 = vector.broadcast %cst_13 : f32 to vector<8x1xf32>
    %28 = arith.maximumf %26, %27 : vector<8x1xf32>
    %29 = math.sqrt %21 : vector<8x1xf32>
    %30 = math.sqrt %28 : vector<8x1xf32>
    %31 = arith.subf %29, %30 : vector<8x1xf32>
    %cst_14 = arith.constant 1.000000e+00 : f32
    %32 = vector.broadcast %cst_14 : f32 to vector<8x1xf32>
    %33 = arith.addf %31, %32 : vector<8x1xf32>
    %cst_15 = arith.constant 0.000000e+00 : f32
    %34 = vector.broadcast %cst_15 : f32 to vector<8x1xf32>
    %35 = arith.maximumf %33, %34 : vector<8x1xf32>
    %36 = vector.shape_cast %7 : vector<8x1xf32> to vector<1x8x1xf32>
    %cst_16 = arith.constant dense<0.000000e+00> : vector<1xf32>
    %37 = vector.multi_reduction <add>, %36, %cst_16 [1, 2] : vector<1x8x1xf32> to vector<1xf32>
    %38 = vector.shape_cast %37 : vector<1xf32> to vector<1x1x1xf32>
    %39 = vector.extract %38[0, 0, 0] : f32 from vector<1x1x1xf32>
    %40 = vector.shape_cast %35 : vector<8x1xf32> to vector<1x8x1xf32>
    %cst_17 = arith.constant dense<0.000000e+00> : vector<1xf32>
    %41 = vector.multi_reduction <add>, %40, %cst_17 [1, 2] : vector<1x8x1xf32> to vector<1xf32>
    %42 = vector.shape_cast %41 : vector<1xf32> to vector<1x1x1xf32>
    %43 = vector.extract %42[0, 0, 0] : f32 from vector<1x1x1xf32>
    %44 = tpu.iota {dimensions = array<i32: 1>} : vector<8x128xi32>
    %c0_i32 = arith.constant 0 : i32
    %45 = vector.broadcast %c0_i32 : i32 to vector<8x128xi32>
    %46 = arith.cmpi eq, %44, %45 : vector<8x128xi32>
    %c1_i32 = arith.constant 1 : i32
    %47 = vector.broadcast %c1_i32 : i32 to vector<8x128xi32>
    %48 = arith.cmpi eq, %44, %47 : vector<8x128xi32>
    %cst_18 = arith.constant 0.000000e+00 : f32
    %49 = vector.broadcast %43 : f32 to vector<8x128xf32>
    %50 = vector.broadcast %cst_18 : f32 to vector<8x128xf32>
    %51 = arith.select %48, %49, %50 : vector<8x128xi1>, vector<8x128xf32>
    %52 = vector.broadcast %39 : f32 to vector<8x128xf32>
    %53 = arith.select %46, %52, %51 : vector<8x128xi1>, vector<8x128xf32>
    %c0_19 = arith.constant 0 : index
    %c0_20 = arith.constant 0 : index
    %c0_21 = arith.constant 0 : index
    %54 = vector.load %arg4[%c0_19, %c0_20, %c0_21] : memref<1x8x128xf32, #tpu.memory_space<vmem>>, vector<1x8x128xf32>
    %55 = vector.shape_cast %54 : vector<1x8x128xf32> to vector<8x128xf32>
    %56 = vector.shape_cast %53 : vector<8x128xf32> to vector<1x8x128xf32>
    tpu.vector_store %arg4[%c0_19, %c0_20, %c0_21], %56 {strides = array<i32>} : memref<1x8x128xf32, #tpu.memory_space<vmem>>, vector<1x8x128xf32>,
    return
  }
  func.func @transform_0(%arg0: i32) -> (i32, i32) {
    %c0_i32 = arith.constant 0 : i32
    %c0_i32_0 = arith.constant 0 : i32
    return %arg0, %c0_i32 : i32, i32
  }
  func.func @transform_1(%arg0: i32) -> (i32, i32) {
    %c0_i32 = arith.constant 0 : i32
    %c0_i32_0 = arith.constant 0 : i32
    return %arg0, %c0_i32 : i32, i32
  }
  func.func @transform_2(%arg0: i32) -> (i32, i32) {
    %c0_i32 = arith.constant 0 : i32
    %c0_i32_0 = arith.constant 0 : i32
    return %arg0, %c0_i32 : i32, i32
  }
  func.func @transform_3(%arg0: i32) -> (i32, i32, i32) {
    %c0_i32 = arith.constant 0 : i32
    %c0_i32_0 = arith.constant 0 : i32
    %c0_i32_1 = arith.constant 0 : i32
    return %arg0, %c0_i32, %c0_i32_0 : i32, i32, i32
  }
}

</mosaic_0001>

<llo_original>
// kernel: object_latent_loss.1
$region0: #{object_latent_loss.1}
  #allocation0 [shape = 'u32[]', space=smem, size = 0x4, offset = 0x4, fixed_abs, tag = 'smem constant byte address 0x4 - core index']
  #allocation1 [shape = 'u32[144,128]{1,0:T(1,128)}', space=vmem, size = 0x12000, scoped, tag = 'internal scratch']
  %s0 = inlined_call_operand.hbm [shape: f32[8,128], index: 0, kind: input, shape index: {}]
  %s1 = inlined_call_operand.hbm [shape: f32[8,128], index: 1, kind: input, shape index: {}]
  %s2 = inlined_call_operand.hbm [shape: f32[8,128], index: 2, kind: input, shape index: {}]
  %s3 = inlined_call_operand.vmem [shape: f32[1,8,128], index: 3, kind: output, shape index: {}]
  %s4 = sld [smem:[#allocation0]]
  $region34: #{object_latent_loss.1} parent=0
    _
  %s6 = ssub.s32 1, %s4
  %s7 = scalar_select 0, %s6, %s4
  $region1: #{object_latent_loss.1} parent=0
    #allocation2 [shape = 'u8[4096]{0}', space=vmem, size = 0x1000, scoped, tag = 'input window, operand 0, single buffered']
    #allocation3 [shape = 's32[1]{0}', space=sflag, size = 0x4, scoped, tag = 'scoped memory for object_latent_loss.1']
    #allocation4 [shape = 'u8[4096]{0}', space=vmem, size = 0x1000, scoped, tag = 'input window, operand 1, single buffered']
    #allocation5 [shape = 's32[1]{0}', space=sflag, size = 0x4, scoped, tag = 'scoped memory for object_latent_loss.1']
    #allocation6 [shape = 'u8[4096]{0}', space=vmem, size = 0x1000, scoped, tag = 'input window, operand 2, single buffered']
    %8 = vsyncpa [#allocation3], 0
    %9 = vsyncpa [#allocation5], 0
    // Predicated region
    $region2: #{object_latent_loss.1} parent=1 // pred_check
      _
    $region3: #{object_latent_loss.1} parent=1 // pred_check_branch
      %11 = sbr.rel (0) target = $region5
    $region4: #{object_latent_loss.1} parent=1 // pred_region
      %s13 = ssub.s32 128, 128
      %14 = vsyncadd [#allocation3], %s13
      %s16 = sshll.u32 [#allocation2], 4
      %s17 = int_to_ptr.vmem [resolvable:$true] %s16
      %19 = dma.hbm_to_vmem [thread:$0]  %s0, 128, %s17, [#allocation3]
    $region5: #{object_latent_loss.1} parent=1 // pred_fallthru
      _
    // Predicated region
    $region6: #{object_latent_loss.1} parent=1 // pred_check
      _
    $region7: #{object_latent_loss.1} parent=1 // pred_check_branch
      %21 = sbr.rel (0) target = $region9
    $region8: #{object_latent_loss.1} parent=1 // pred_region
      %s23 = ssub.s32 128, 128
      %24 = vsyncadd [#allocation5], %s23
      %s26 = sshll.u32 [#allocation4], 4
      %s27 = int_to_ptr.vmem [resolvable:$true] %s26
      %29 = dma.hbm_to_vmem [thread:$0]  %s1, 128, %s27, [#allocation5]
    $region9: #{object_latent_loss.1} parent=1 // pred_fallthru
      _
    // Predicated region
    $region10: #{object_latent_loss.1} parent=1 // pred_check
      _
    $region11: #{object_latent_loss.1} parent=1 // pred_check_branch
      %31 = sbr.rel (0) target = $region13
    $region12: #{object_latent_loss.1} parent=1 // pred_region
      %s33 = ssub.s32 128, 128
      %34 = vsyncadd [#allocation5], %s33
      %s36 = sshll.u32 [#allocation6], 4
      %s37 = int_to_ptr.vmem [resolvable:$true] %s36
      %39 = dma.hbm_to_vmem [thread:$0]  %s2, 128, %s37, [#allocation5]
    $region13: #{object_latent_loss.1} parent=1 // pred_fallthru
      _
    // Predicated region
    $region14: #{object_latent_loss.1} parent=1 // pred_check
      _
    $region15: #{object_latent_loss.1} parent=1 // pred_check_branch
      %41 = sbr.rel (0) target = $region17
    $region16: #{object_latent_loss.1} parent=1 // pred_region
      %42 = dma.done [#allocation3], 128
    $region17: #{object_latent_loss.1} parent=1 // pred_fallthru
      _
    // Predicated region
    $region18: #{object_latent_loss.1} parent=1 // pred_check
      _
    $region19: #{object_latent_loss.1} parent=1 // pred_check_branch
      %44 = sbr.rel (0) target = $region21
    $region20: #{object_latent_loss.1} parent=1 // pred_region
      %45 = dma.done [#allocation5], 128
    $region21: #{object_latent_loss.1} parent=1 // pred_fallthru
      _
    // Predicated region
    $region22: #{object_latent_loss.1} parent=1 // pred_check
      _
    $region23: #{object_latent_loss.1} parent=1 // pred_check_branch
      %47 = sbr.rel (0) target = $region25
    $region24: #{object_latent_loss.1} parent=1 // pred_region
      %48 = dma.done [#allocation5], 128
    $region25: #{object_latent_loss.1} parent=1 // pred_fallthru
      _
    %v49 = vld [vmem:[#allocation2] sm:$0xff]
    %v50 = vld [vmem:[#allocation4] sm:$0xff]
    %v51 = vld [vmem:[#allocation6] sm:$0xff]
    %v52 = vsub.f32 %v49, %v50
    %v53 = vsub.f32 %v49, %v51
    %v54 = vmul.f32 %v52, %v52
    %55 = vadd.xlane.f32.xlu0 %v54
    %v56 = vpop.xlane.xlu0 %55
    %57 = vadd.xlane.f32.xlu0 %v52
    %v58 = vpop.xlane.xlu0 %57
    %v59 = vmul.f32 %v53, %v53
    %60 = vadd.xlane.f32.xlu0 %v59
    %v61 = vpop.xlane.xlu0 %60
    %62 = vadd.xlane.f32.xlu0 %v53
    %v63 = vpop.xlane.xlu0 %62
    %v64 = vmul.f32 %v58, 2e-06
    %v65 = vadd.f32 %v56, %v64
    %v66 = vadd.f32 %v65, 1.28e-10
    %v67 = vmax.f32 %v66, 0.0
    %v68 = vmul.f32 %v63, 2e-06
    %v69 = vadd.f32 %v61, %v68
    %v70 = vadd.f32 %v69, 1.28e-10
    %v71 = vmax.f32 %v70, 0.0
    %v72 = vrsqrt.pop %v67
    %v73 = vmul.f32 %v67, %v72
    %vm74 = vcmp.eq.f32.partialorder %v67, inf
    %v75 = vsel %vm74, %v67, %v73
    %vm76 = vcmp.eq.f32.partialorder %v67, 0.0
    %v77 = vand.u32 %v67, 2147483648
    %v78 = vsel %vm76, %v77, %v75
    %v79 = vrsqrt.pop %v71
    %v80 = vmul.f32 %v71, %v79
    %vm81 = vcmp.eq.f32.partialorder %v71, inf
    %v82 = vsel %vm81, %v71, %v80
    %vm83 = vcmp.eq.f32.partialorder %v71, 0.0
    %v84 = vand.u32 %v71, 2147483648
    %v85 = vsel %vm83, %v84, %v82
    %v86 = vsub.f32 %v78, %v85
    %v87 = vadd.f32 %v86, 1.0
    %v88 = vmax.f32 %v87, 0.0
    %vm89 = vcmask 7168
    %v90 = vsel %vm89, %v56, 0.0
    %91 = vadd.xlane.f32.xlu0 %v90
    %v92 = vpop.xlane.xlu0 %91
    %v93 = vrot.slane %v92, 4
    %v94 = vadd.f32 %v92, %v93
    %v95 = vrot.slane %v94, 2
    %v96 = vadd.f32 %v94, %v95
    %v97 = vrot.slane %v96, 1
    %v98 = vadd.f32 %v96, %v97
    %s99 = vtos %v98
    %v100 = vsel %vm89, %v88, 0.0
    %101 = vadd.xlane.f32.xlu0 %v100
    %v102 = vpop.xlane.xlu0 %101
    %v103 = vrot.slane %v102, 4
    %v104 = vadd.f32 %v102, %v103
    %v105 = vrot.slane %v104, 2
    %v106 = vadd.f32 %v104, %v105
    %v107 = vrot.slane %v106, 1
    %v108 = vadd.f32 %v106, %v107
    %s109 = vtos %v108
    %v110 = vlaneseq
    %v111 = vand.u32 %v110, 127
    %vm112 = vcmp.eq.s32.totalorder %v111, 0
    %vm113 = vcmp.eq.s32.totalorder %v111, 1
    %v114 = vstv %s109
    %v115 = vsel %vm113, %v114, 0.0
    %v116 = vstv %s99
    %v117 = vsel %vm112, %v116, %v115
    %118 = vst [vmem:[%s3] sm:$0xff] %v117
    // Predicated region
    $region26: #{object_latent_loss.1} parent=1 // pred_check
      _
    $region27: #{object_latent_loss.1} parent=1 // pred_check_branch
      %120 = sbr.rel (0) target = $region29
    $region28: #{object_latent_loss.1} parent=1 // pred_region
      _
    $region29: #{object_latent_loss.1} parent=1 // pred_fallthru
      _
    // Predicated region
    $region30: #{object_latent_loss.1} parent=1 // pred_check
      _
    $region31: #{object_latent_loss.1} parent=1 // pred_check_branch
      %122 = sbr.rel (0) target = $region33
    $region32: #{object_latent_loss.1} parent=1 // pred_region
      _
    $region33: #{object_latent_loss.1} parent=1 // pred_fallthru
      _
    %123 = vsyncpa [#allocation3], 1
    %124 = vsyncpa [#allocation5], 1

</llo_original>
